<compile_context>
chip_gen: v7x
topology: tpu7x:2x2x1
jax: 0.10.0
libtpu: 0.0.40
codegen_flags: <defaults>
</compile_context>

<pallas_src>
import functools

import jax
import jax.numpy as jnp
from jax.experimental import pallas as pl
from jax.experimental.pallas import tpu as pltpu


def _logreg_kernel(x_ref, wt_ref, b_ref, out_ref, *, num_classes):
    # x_ref: (TILE_N, D), wt_ref: (D, C_pad), b_ref: (1, C_pad),
    # out_ref: (TILE_N, C_pad)
    scores = jnp.dot(x_ref[...], wt_ref[...],
                     preferred_element_type=jnp.float32)      # MXU, f32 acc
    scores = scores + b_ref[...]                              # (1,C_pad) bcast

    # Lane mask for the real (unpadded) classes.
    lane = jax.lax.broadcasted_iota(jnp.int32, scores.shape, 1)
    valid = lane < num_classes

    # Numerically stable row-softmax over the (valid) class axis.
    masked = jnp.where(valid, scores, jnp.float32(-1e30))
    m = jnp.max(masked, axis=1, keepdims=True)
    e = jnp.where(valid, jnp.exp(scores - m), jnp.float32(0.0))
    denom = jnp.sum(e, axis=1, keepdims=True)
    out_ref[...] = (e / denom).astype(out_ref.dtype)          # exact normalize


def ptlogreg_forward(X, W, b, *, compute_dtype=jnp.bfloat16, max_tile_n=512):
    """softmax(X @ W.T + b) computed in a single tiled Pallas TPU kernel.

    X: (N, D), W: (C, D), b: (C,) -> returns (N, C) float32 probabilities.
    """
    N, D = X.shape
    C, Dw = W.shape
    assert D == Dw

    # Lane-dense padded class axis (multiple of 128).
    C_pad = max(128, pl.cdiv(C, 128) * 128)

    # Pre-transpose + pad the weight once, outside the kernel: (D, C_pad).
    Wt = jnp.zeros((D, C_pad), dtype=compute_dtype)
    Wt = Wt.at[:, :C].set(W.T.astype(compute_dtype))
    # Padded bias entries are zero; the kernel masks padded lanes explicitly.
    b_pad = jnp.zeros((1, C_pad), dtype=jnp.float32)
    b_pad = b_pad.at[0, :C].set(b.astype(jnp.float32))

    # Pad the batch axis to a sublane-friendly multiple of 8 (and to a
    # multiple of TILE_N when tiled) so every block is full.
    if N <= max_tile_n:
        TILE_N = pl.cdiv(N, 8) * 8
        N_pad = TILE_N
    else:
        TILE_N = max_tile_n
        N_pad = pl.cdiv(N, TILE_N) * TILE_N

    Xc = jnp.zeros((N_pad, D), dtype=compute_dtype)
    Xc = Xc.at[:N, :].set(X.astype(compute_dtype))

    grid = (N_pad // TILE_N,)

    itemsize = jnp.dtype(compute_dtype).itemsize
    cost = pl.CostEstimate(
        flops=2 * N_pad * D * C_pad,
        transcendentals=N_pad * C_pad,
        bytes_accessed=(N_pad * D * itemsize + D * C_pad * itemsize
                        + N_pad * C_pad * 4),
    )

    out_pad = pl.pallas_call(
        functools.partial(_logreg_kernel, num_classes=C),
        out_shape=jax.ShapeDtypeStruct((N_pad, C_pad), jnp.float32),
        grid_spec=pl.GridSpec(
            grid=grid,
            in_specs=[
                pl.BlockSpec((TILE_N, D), lambda i: (i, 0)),   # streamed rows
                pl.BlockSpec((D, C_pad), lambda i: (0, 0)),    # resident weight
                pl.BlockSpec((1, C_pad), lambda i: (0, 0)),    # resident bias
            ],
            out_specs=pl.BlockSpec((TILE_N, C_pad), lambda i: (i, 0)),
        ),
        compiler_params=pltpu.CompilerParams(
            dimension_semantics=("parallel",),
        ),
        cost_estimate=cost,
    )(Xc, Wt, b_pad)

    return out_pad[:N, :C]


def reference_forward(X, W, b):
    scores = X @ W.T + b
    return jax.nn.softmax(scores, axis=1)


# TODO(synk): get_loss (NLL over one-hot targets) and the optimizer loop are
# host-side training code and are not kernelized here; only forward() is.


if __name__ == "__main__":
    # Small shapes consistent with the module: N datapoints of dim D, C classes.
    N, D, C = 8, 32, 4

    key = jax.random.PRNGKey(0)
    kx, kw = jax.random.split(key)

    X = jax.random.normal(kx, (N, D), dtype=jnp.float32)
    # Param init mirroring __init__: W ~ randn(C, D), b = zeros(C).
    W = jax.random.normal(kw, (C, D), dtype=jnp.float32)
    b = jnp.zeros((C,), dtype=jnp.float32)

    ref = reference_forward(X, W, b)

    # Exact-semantics path (f32 MXU inputs).
    probs = jax.block_until_ready(
        ptlogreg_forward(X, W, b, compute_dtype=jnp.float32))
    assert probs.shape == (N, C)
    assert jnp.allclose(probs, ref, atol=2e-3, rtol=2e-3), "f32 mismatch vs reference"
    assert jnp.allclose(jnp.sum(probs, axis=1), jnp.ones(N), atol=1e-4), "rows don't sum to 1"

    # Fast path (bf16 MXU inputs, f32 accumulation) -- default on v6e/v7x.
    probs_bf16 = jax.block_until_ready(
        ptlogreg_forward(X, W, b, compute_dtype=jnp.bfloat16))
    assert probs_bf16.shape == (N, C)
    assert jnp.allclose(probs_bf16, ref, atol=2e-2, rtol=2e-2), "bf16 mismatch vs reference"
    assert jnp.allclose(jnp.sum(probs_bf16, axis=1), jnp.ones(N), atol=1e-4)

    print("KERNEL_OK")
</pallas_src>

<mosaic_0001>
module attributes {stable_mosaic.version = 11 : i64} {
  func.func @_logreg_kernel(%arg0: i32, %arg1: memref<8x32xf32, #tpu.memory_space<vmem>>, %arg2: memref<32x128xf32, #tpu.memory_space<vmem>>, %arg3: memref<1x128xf32, #tpu.memory_space<vmem>>, %arg4: memref<8x128xf32, #tpu.memory_space<vmem>>) attributes {dimension_semantics = [#tpu.dimension_semantics<parallel>], iteration_bounds = array<i64: 1>, scalar_prefetch = 0 : i64, scratch_operands = 0 : i64, tpu.core_type = #tpu.core_type<tc>, window_params = [{transform_indices = @transform_0, window_bounds = array<i64: 8, 32>}, {pipeline_mode = #tpu.pipeline_mode<synchronous>, transform_indices = @transform_1, window_bounds = array<i64: 32, 128>}, {pipeline_mode = #tpu.pipeline_mode<synchronous>, transform_indices = @transform_2, window_bounds = array<i64: 1, 128>}, {transform_indices = @transform_3, window_bounds = array<i64: 8, 128>}]} {
    %c0 = arith.constant 0 : index
    %c0_0 = arith.constant 0 : index
    %0 = vector.load %arg1[%c0, %c0_0] : memref<8x32xf32, #tpu.memory_space<vmem>>, vector<8x32xf32>
    %c0_1 = arith.constant 0 : index
    %c0_2 = arith.constant 0 : index
    %1 = vector.load %arg2[%c0_1, %c0_2] : memref<32x128xf32, #tpu.memory_space<vmem>>, vector<32x128xf32>
    %cst = arith.constant dense<0.000000e+00> : vector<8x128xf32>
    %2 = tpu.matmul %0, %1, %cst {dimension_numbers = #tpu.dot_dimension_numbers<[1], [0], [0], [1], [0, 0, 1, 1], [], []>} : vector<8x32xf32>, vector<32x128xf32>, vector<8x128xf32> -> vector<8x128xf32>
    %c0_3 = arith.constant 0 : index
    %c0_4 = arith.constant 0 : index
    %3 = vector.load %arg3[%c0_3, %c0_4] : memref<1x128xf32, #tpu.memory_space<vmem>>, vector<1x128xf32>
    %4 = vector.broadcast %3 : vector<1x128xf32> to vector<8x128xf32>
    %5 = arith.addf %2, %4 : vector<8x128xf32>
    %6 = tpu.iota {dimensions = array<i32: 1>} : vector<8x128xi32>
    %c4_i32 = arith.constant 4 : i32
    %7 = vector.broadcast %c4_i32 : i32 to vector<8x128xi32>
    %8 = arith.cmpi slt, %6, %7 : vector<8x128xi32>
    %cst_5 = arith.constant -1.000000e+30 : f32
    %9 = vector.broadcast %cst_5 : f32 to vector<8x128xf32>
    %10 = arith.select %8, %5, %9 : vector<8x128xi1>, vector<8x128xf32>
    %cst_6 = arith.constant dense<0xFF800000> : vector<8xf32>
    %11 = vector.multi_reduction <maximumf>, %10, %cst_6 [1] : vector<8x128xf32> to vector<8xf32>
    %12 = vector.shape_cast %11 : vector<8xf32> to vector<8x1xf32>
    %13 = vector.broadcast %12 : vector<8x1xf32> to vector<8x128xf32>
    %14 = arith.subf %5, %13 : vector<8x128xf32>
    %15 = math.exp %14 : vector<8x128xf32>
    %cst_7 = arith.constant 0.000000e+00 : f32
    %16 = vector.broadcast %cst_7 : f32 to vector<8x128xf32>
    %17 = arith.select %8, %15, %16 : vector<8x128xi1>, vector<8x128xf32>
    %cst_8 = arith.constant dense<0.000000e+00> : vector<8xf32>
    %18 = vector.multi_reduction <add>, %17, %cst_8 [1] : vector<8x128xf32> to vector<8xf32>
    %19 = vector.shape_cast %18 : vector<8xf32> to vector<8x1xf32>
    %20 = vector.broadcast %19 : vector<8x1xf32> to vector<8x128xf32>
    %21 = arith.divf %17, %20 : vector<8x128xf32>
    %c0_9 = arith.constant 0 : index
    %c0_10 = arith.constant 0 : index
    %22 = vector.load %arg4[%c0_9, %c0_10] : memref<8x128xf32, #tpu.memory_space<vmem>>, vector<8x128xf32>
    tpu.vector_store %arg4[%c0_9, %c0_10], %21 {strides = array<i32>} : memref<8x128xf32, #tpu.memory_space<vmem>>, vector<8x128xf32>,
    return
  }
  func.func @transform_0(%arg0: i32) -> (i32, i32) {
    %c0_i32 = arith.constant 0 : i32
    %c0_i32_0 = arith.constant 0 : i32
    return %arg0, %c0_i32 : i32, i32
  }
  func.func @transform_1(%arg0: i32) -> (i32, i32) {
    %c0_i32 = arith.constant 0 : i32
    %c0_i32_0 = arith.constant 0 : i32
    %c0_i32_1 = arith.constant 0 : i32
    return %c0_i32, %c0_i32_0 : i32, i32
  }
  func.func @transform_2(%arg0: i32) -> (i32, i32) {
    %c0_i32 = arith.constant 0 : i32
    %c0_i32_0 = arith.constant 0 : i32
    %c0_i32_1 = arith.constant 0 : i32
    return %c0_i32, %c0_i32_0 : i32, i32
  }
  func.func @transform_3(%arg0: i32) -> (i32, i32) {
    %c0_i32 = arith.constant 0 : i32
    %c0_i32_0 = arith.constant 0 : i32
    return %arg0, %c0_i32 : i32, i32
  }
}

</mosaic_0001>

<llo_original>
// kernel: tpu_custom_call.1
$region0: #{tpu_custom_call.1}
  #allocation0 [shape = 'u32[]', space=smem, size = 0x4, offset = 0x4, fixed_abs, tag = 'smem constant byte address 0x4 - core index']
  #allocation1 [shape = 'u32[144,128]{1,0:T(1,128)}', space=vmem, size = 0x12000, scoped, tag = 'internal scratch']
  %s0 = inlined_call_operand.hbm [shape: f32[8,32], index: 0, kind: input, shape index: {}]
  %s1 = inlined_call_operand.hbm [shape: f32[32,128], index: 1, kind: input, shape index: {}]
  %s2 = inlined_call_operand.vmem [shape: f32[1,128], index: 2, kind: input, shape index: {}]
  %s3 = inlined_call_operand.hbm [shape: f32[8,128], index: 3, kind: output, shape index: {}]
  %s4 = sld [smem:[#allocation0]]
  $region30: #{tpu_custom_call.1} parent=0
    _
  %s6 = ssub.s32 1, %s4
  %s7 = scalar_select 0, %s6, %s4
  $region1: #{tpu_custom_call.1} parent=0
    #allocation2 [shape = 'u8[4096]{0}', space=vmem, size = 0x1000, scoped, tag = 'input window, operand 0, single buffered']
    #allocation3 [shape = 's32[1]{0}', space=sflag, size = 0x4, scoped, tag = 'scoped memory for tpu_custom_call.1']
    #allocation4 [shape = 's32[1]{0}', space=sflag, size = 0x4, scoped, tag = 'scoped memory for tpu_custom_call.1']
    #allocation5 [shape = 'u8[16384]{0}', space=vmem, size = 0x4000, scoped, tag = 'input window, operand 1, single buffered']
    #allocation6 [shape = 's32[1]{0}', space=sflag, size = 0x4, scoped, tag = 'scoped memory for tpu_custom_call.1']
    #allocation7 [shape = 'u8[4096]{0}', space=vmem, size = 0x1000, scoped, tag = 'output window, operand 0, single buffered']
    %8 = vsyncpa [#allocation3], 0
    %9 = vsyncpa [#allocation6], 0
    %10 = vsyncpa [#allocation4], 0
    // Predicated region
    $region2: #{tpu_custom_call.1} parent=1 // pred_check
      _
    $region3: #{tpu_custom_call.1} parent=1 // pred_check_branch
      %12 = sbr.rel (0) target = $region5
    $region4: #{tpu_custom_call.1} parent=1 // pred_region
      %s14 = ssub.s32 128, 128
      %15 = vsyncadd [#allocation3], %s14
      %s17 = sshll.u32 [#allocation2], 4
      %s18 = int_to_ptr.vmem [resolvable:$true] %s17
      %20 = dma.hbm_to_vmem [thread:$0]  %s0, 128, %s18, [#allocation3]
    $region5: #{tpu_custom_call.1} parent=1 // pred_fallthru
      _
    // Predicated region
    $region6: #{tpu_custom_call.1} parent=1 // pred_check
      _
    $region7: #{tpu_custom_call.1} parent=1 // pred_check_branch
      %22 = sbr.rel (0) target = $region9
    $region8: #{tpu_custom_call.1} parent=1 // pred_region
      %s24 = ssub.s32 512, 512
      %25 = vsyncadd [#allocation6], %s24
      %s26 = sshll.u32 [#allocation5], 4
      %s27 = int_to_ptr.vmem [resolvable:$true] %s26
      %32 = dma.hbm_to_vmem [thread:$0]  %s1, 512, %s27, [#allocation6], 128, 128, 8
    $region9: #{tpu_custom_call.1} parent=1 // pred_fallthru
      _
    // Predicated region
    $region10: #{tpu_custom_call.1} parent=1 // pred_check
      _
    $region11: #{tpu_custom_call.1} parent=1 // pred_check_branch
      %34 = sbr.rel (0) target = $region13
    $region12: #{tpu_custom_call.1} parent=1 // pred_region
      _
    $region13: #{tpu_custom_call.1} parent=1 // pred_fallthru
      _
    // Predicated region
    $region14: #{tpu_custom_call.1} parent=1 // pred_check
      _
    $region15: #{tpu_custom_call.1} parent=1 // pred_check_branch
      %36 = sbr.rel (0) target = $region17
    $region16: #{tpu_custom_call.1} parent=1 // pred_region
      %37 = dma.done [#allocation3], 128
    $region17: #{tpu_custom_call.1} parent=1 // pred_fallthru
      _
    // Predicated region
    $region18: #{tpu_custom_call.1} parent=1 // pred_check
      _
    $region19: #{tpu_custom_call.1} parent=1 // pred_check_branch
      %39 = sbr.rel (0) target = $region21
    $region20: #{tpu_custom_call.1} parent=1 // pred_region
      %40 = dma.done [#allocation6], 512
    $region21: #{tpu_custom_call.1} parent=1 // pred_fallthru
      _
    %v41 = vld [vmem:[#allocation2] sm:$0xff]
    %v42 = vld [vmem:[#allocation5] sm:$0xff]
    %v43 = vld [vmem:[#allocation5 + $0x8] sm:$0xff]
    %v44 = vld [vmem:[#allocation5 + $0x10] sm:$0xff]
    %v45 = vld [vmem:[#allocation5 + $0x18] sm:$0xff]
    %v46 = vld [vmem:[%s2] sm:$0x1]
    %v48 = vlaneseq
    %v49 = vshrl.u32 %v48, 7
    %v50 = vsub.s32 0, %v49
    %v51 = vrot.slane %v46, %v50
    %vm53 = vcmask 261120
    %v55 = vsel %vm53, %v41, 0
    %57 = vmatprep.subr.mxu0 0.0
    %58 = vmatpush1.msra.mxu0 %v42
    %59 = vmatprep.subr.mxu0 0.0
    %60 = vmatpush1.msra.mxu0 %v43
    %61 = vmatprep.subr.mxu0 0.0
    %62 = vmatpush1.msra.mxu0 %v44
    %63 = vmatprep.subr.mxu0 0.0
    %64 = vmatpush1.msra.mxu0 %v45
    %65 = vmatprep.subr.mxu0 0.0
    %66 = vmatpush1.msra.mxu0 0.0
    %67 = vmatprep.subr.mxu0 0.0
    %68 = vmatpush1.msra.mxu0 0.0
    %69 = vmatprep.subr.mxu0 0.0
    %70 = vmatpush1.msra.mxu0 0.0
    %71 = vmatprep.subr.mxu0 0.0
    %72 = vmatpush1.msra.mxu0 0.0
    %73 = vmatprep.subr.mxu0 0.0
    %74 = vmatpush1.msra.mxu0 0.0
    %75 = vmatprep.subr.mxu0 0.0
    %76 = vmatpush1.msra.mxu0 0.0
    %77 = vmatprep.subr.mxu0 0.0
    %78 = vmatpush1.msra.mxu0 0.0
    %79 = vmatprep.subr.mxu0 0.0
    %80 = vmatpush1.msra.mxu0 0.0
    %81 = vmatprep.subr.mxu0 0.0
    %82 = vmatpush1.msra.mxu0 0.0
    %83 = vmatprep.subr.mxu0 0.0
    %84 = vmatpush1.msra.mxu0 0.0
    %85 = vmatprep.subr.mxu0 0.0
    %86 = vmatpush1.msra.mxu0 0.0
    %87 = vmatprep.subr.mxu0 0.0
    %88 = vmatpush1.msra.mxu0 0.0
    %89 = vmatprep.subr.mxu0 0.0
    %90 = vmatpush1.msra.mxu0 0.0
    %91 = vmatprep.subr.mxu0 0.0
    %92 = vmatpush1.msra.mxu0 0.0
    %93 = vmatprep.subr.mxu0 0.0
    %94 = vmatpush1.msra.mxu0 0.0
    %95 = vmatprep.subr.mxu0 0.0
    %96 = vmatpush1.msra.mxu0 0.0
    %97 = vmatprep.subr.mxu0 0.0
    %98 = vmatpush1.msra.mxu0 0.0
    %99 = vmatprep.subr.mxu0 0.0
    %100 = vmatpush1.msra.mxu0 0.0
    %101 = vmatprep.subr.mxu0 0.0
    %102 = vmatpush1.msra.mxu0 0.0
    %103 = vmatprep.subr.mxu0 0.0
    %104 = vmatpush1.msra.mxu0 0.0
    %105 = vmatprep.subr.mxu0 0.0
    %106 = vmatpush1.msra.mxu0 0.0
    %107 = vmatprep.subr.mxu0 0.0
    %108 = vmatpush1.msra.mxu0 0.0
    %109 = vmatprep.subr.mxu0 0.0
    %110 = vmatpush1.msra.mxu0 0.0
    %111 = vmatprep.subr.mxu0 0.0
    %112 = vmatpush1.msra.mxu0 0.0
    %113 = vmatprep.subr.mxu0 0.0
    %114 = vmatpush1.msra.mxu0 0.0
    %115 = vmatprep.subr.mxu0 0.0
    %116 = vmatpush1.msra.mxu0 0.0
    %117 = vmatprep.subr.mxu0 0.0
    %118 = vmatpush1.msra.mxu0 0.0
    %119 = vmatprep.subr.mxu0 0.0
    %120 = vmatpush1.msra.mxu0 0.0
    %121 = vmatprep.mubr.f32.mxu0 0.0
    %122 = vmatmul.mubr.f32.gmra.mrb[0].mxu0 %v55
    %v123 = vpop.f32.mrb[0].mxu0
    %v124 = vadd.f32 %v51, %v123
    %v125 = vpop.f32.mrb[0].mxu0
    %126 = vdwg.mxu0
    %v127 = vlaneseq
    %v128 = vand.u32 %v127, 127
    %vm129 = vcmp.lt.s32.totalorder %v128, 4
    %v130 = vsel %vm129, %v124, -1e+30
    %131 = vmax.xlane.f32.xlu0 %v130
    %v132 = vpop.xlane.xlu0 %131
    %v133 = vsub.f32 %v124, %v132
    %v134 = vmul.f32 %v133, 1.442695
    %v135 = vpow.pop %v134
    %v136 = vsel %vm129, %v135, 0.0
    %137 = vadd.xlane.f32.xlu0 %v136
    %v138 = vpop.xlane.xlu0 %137
    %v139 = vrcp.pop %v138
    %v140 = vmul.f32 %v136, %v139
    %141 = vst [vmem:[#allocation7] sm:$0xff] %v140
    // Predicated region
    $region22: #{tpu_custom_call.1} parent=1 // pred_check
      _
    $region23: #{tpu_custom_call.1} parent=1 // pred_check_branch
      %143 = sbr.rel (0) target = $region25
    $region24: #{tpu_custom_call.1} parent=1 // pred_region
      %s145 = ssub.s32 128, 128
      %146 = vsyncadd [#allocation4], %s145
      %s148 = sshll.u32 [#allocation7], 4
      %s149 = int_to_ptr.vmem [resolvable:$true] %s148
      %151 = dma.vmem_to_hbm [thread:$0]  %s149, 128, %s3, [#allocation4]
    $region25: #{tpu_custom_call.1} parent=1 // pred_fallthru
      _
    // Predicated region
    $region26: #{tpu_custom_call.1} parent=1 // pred_check
      _
    $region27: #{tpu_custom_call.1} parent=1 // pred_check_branch
      %153 = sbr.rel (0) target = $region29
    $region28: #{tpu_custom_call.1} parent=1 // pred_region
      %154 = dma.done [#allocation4], 128
    $region29: #{tpu_custom_call.1} parent=1 // pred_fallthru
      _
    %155 = vsyncpa [#allocation3], 1
    %156 = vsyncpa [#allocation6], 1
    %157 = vsyncpa [#allocation4], 1

</llo_original>
